<compile_context>
chip_gen: v7x
topology: tpu7x:2x2x1
jax: 0.10.0
libtpu: 0.0.40
codegen_flags: <defaults>
</compile_context>

<pallas_src>
import jax
import jax.numpy as jnp
from jax import lax
from jax.experimental import pallas as pl
from jax.experimental.pallas import tpu as pltpu

NEG = -1.0e9  # padding potential; exp(NEG - anything reasonable) == 0.0 in f32

# Set to jnp.bfloat16 on v5e (~0.82 TB/s HBM) to halve the emission stream; the kernel
# upcasts to f32 before the recursion.  Kept f32 here so the correctness check below is
# tight on every generation.
EMIS_STREAM_DTYPE = jnp.float32


def _round_up(x, m):
    return ((x + m - 1) // m) * m


def _pick_tiles(B, T_rec, P, emis_itemsize):
    """Choose batch tile TB, padded batch Bp, time chunk TC, padded recursion length Tp."""
    Bp8 = _round_up(max(B, 1), 8)
    if Bp8 <= 16:
        TB = Bp8                                     # too small to split usefully
    else:
        # keep >= 2 outer ("parallel") iterations so v7x's two TensorCores both work
        TB = min(256, _round_up((Bp8 + 1) // 2, 8))
    Bp = _round_up(max(B, 1), TB)

    # Cap the double-buffered emission chunk at ~12 MiB/buffer: safe inside v7x's
    # 64 MiB VMEM; v5e/v6e (128 MiB) could go larger but this already amortizes the
    # per-grid-step overhead over 8..64 timesteps.
    budget = 12 * 1024 * 1024
    tc_cap = max(8, budget // max(1, TB * P * emis_itemsize))
    TC = max(8, int(min(64, (tc_cap // 8) * 8)))
    if max(T_rec, 1) <= TC:
        TC = _round_up(max(T_rec, 1), 8)
    Tp = _round_up(max(T_rec, 1), TC)
    return TB, Bp, TC, Tp


# ----------------------------------------------------------------------------- kernel
def _crf_fwd_kernel(vinit_ref, emis_ref, lens_ref, exp_trans_ref, denom_ref, v_ref):
    # vinit_ref    : (TB, P)     f32   V at t=0 (start/end transitions folded; NEG pad)
    # emis_ref     : (TC, TB, P) f32   emissions for timesteps 1..T-1 (+tmax; NEG pad)
    # lens_ref     : (TB, 1)     i32   (length - 1) per batch row (0 for padded rows)
    # exp_trans_ref: (P, P)      f32   exp(transitions - tmax), exact 0.0 padding
    # denom_ref    : (TB, 1)     f32   per-batch log partition (written on last chunk)
    # v_ref        : (TB, P)     f32   carry across time chunks (scores over prev tag)
    c = pl.program_id(1)
    nc = pl.num_programs(1)
    tc = emis_ref.shape[0]

    @pl.when(c == 0)
    def _init():
        # t == 0: the constrained "previous state = start" column collapses the first
        # logsumexp to the start-transition-folded emission (mask[:, 0] == 1 assumed).
        v_ref[...] = vinit_ref[...]

    exp_trans = exp_trans_ref[...]       # (P, P)  resident, loaded once
    lens_m1 = lens_ref[...]              # (TB, 1) resident per batch tile

    def step(lt, v):
        emis_t = emis_ref[lt].astype(jnp.float32)                        # (TB, P)
        m = jnp.max(v, axis=-1, keepdims=True)                           # (TB, 1) XLU
        p = jnp.exp(v - m)                                               # (TB, P) EUP
        s = jnp.dot(p, exp_trans, preferred_element_type=jnp.float32)    # (TB, P) MXU
        new_v = m + jnp.log(jnp.maximum(s, 1e-30)) + emis_t              # (TB, P)
        valid = (c * tc + lt) < lens_m1                                  # (TB, 1)
        return jnp.where(valid, new_v, v)

    v_ref[...] = lax.fori_loop(0, tc, step, v_ref[...], unroll=8)

    @pl.when(c == nc - 1)
    def _finalize():
        vf = v_ref[...]
        mx = jnp.max(vf, axis=-1, keepdims=True)
        denom_ref[...] = mx + jnp.log(
            jnp.sum(jnp.exp(vf - mx), axis=-1, keepdims=True))


def _crf_log_partition(vinit_p, emis_p, lens_p, exp_trans_p, TB, TC):
    Bp, P = vinit_p.shape
    Tp = emis_p.shape[0]
    nb = Bp // TB
    nc = Tp // TC
    esize = jnp.dtype(emis_p.dtype).itemsize

    cost = pl.CostEstimate(
        flops=int(Tp * Bp * (2 * P * P + 8 * P)),
        transcendentals=int(Tp * Bp * 2 * P + Bp * P),
        bytes_accessed=int(Tp * Bp * P * esize + (2 * Bp * P + P * P + 4 * Bp) * 4),
    )

    denom = pl.pallas_call(
        _crf_fwd_kernel,
        out_shape=jax.ShapeDtypeStruct((Bp, 1), jnp.float32),
        grid_spec=pltpu.PrefetchScalarGridSpec(
            num_scalar_prefetch=0,
            grid=(nb, nc),
            in_specs=[
                pl.BlockSpec((TB, P), lambda b, c: (b, 0)),        # vinit (per batch tile)
                pl.BlockSpec((TC, TB, P), lambda b, c: (c, b, 0)),  # emission chunk
                pl.BlockSpec((TB, 1), lambda b, c: (b, 0)),        # lengths - 1
                pl.BlockSpec((P, P), lambda b, c: (0, 0)),         # exp(transitions), resident
            ],
            out_specs=pl.BlockSpec((TB, 1), lambda b, c: (b, 0)),
            scratch_shapes=[pltpu.VMEM((TB, P), jnp.float32)],
        ),
        compiler_params=pltpu.CompilerParams(
            dimension_semantics=("parallel", "arbitrary"),
            # ~25 MiB worst case with the 12 MiB/buffer chunk cap; 48 MiB leaves
            # headroom on v7x (64 MiB) and is comfortable on v5e/v6e (128 MiB).
            vmem_limit_bytes=48 * 1024 * 1024,
        ),
        cost_estimate=cost,
    )(vinit_p, emis_p, lens_p, exp_trans_p)
    return denom[:, 0]


# ----------------------------------------------------------------------------- module
class ConditionalRandomField:
    """JAX/Pallas port of the didyprog allennlp-style CRF forward pass.

    Only include_start_end_transitions=True (the torch default) is implemented, and
    masks are assumed to be prefix masks (as the original module's end-index logic
    already requires).
    """

    def __init__(self, num_tags, key, include_start_end_transitions=True):
        assert include_start_end_transitions, "only the default (True) path is implemented"
        k1, k2, k3 = jax.random.split(key, 3)
        self.num_tags = num_tags
        # xavier_normal for (S, S): std = sqrt(2 / (fan_in + fan_out))
        std = (2.0 / (num_tags + num_tags)) ** 0.5
        self.transitions = std * jax.random.normal(k1, (num_tags, num_tags), jnp.float32)
        self.start_transitions = jax.random.normal(k2, (num_tags,), jnp.float32)
        self.end_transitions = jax.random.normal(k3, (num_tags,), jnp.float32)

    def forward(self, inputs, tags, mask=None):
        B, T, S = inputs.shape
        if mask is None:
            mask = jnp.ones((B, T), jnp.int32)
        logits = jnp.transpose(inputs, (1, 0, 2)).astype(jnp.float32)   # (T, B, S)
        mask_t = jnp.transpose(mask, (1, 0)).astype(jnp.int32)          # (T, B)
        tags_t = jnp.transpose(tags, (1, 0)).astype(jnp.int32)          # (T, B)
        mask_f = mask_t.astype(jnp.float32)

        # effective emissions: start transitions folded into t=0, end transitions
        # folded into the last valid timestep (matches _make_potentials since neither
        # term depends on the previous tag).
        lengths = jnp.sum(mask_t, axis=0)                                            # (B,)
        end_idx = lengths - 1
        at_end = (jnp.arange(T)[:, None] == end_idx[None, :]).astype(jnp.float32)    # (T, B)
        emis = logits + at_end[:, :, None] * self.end_transitions[None, None, :]
        emis = emis.at[0].add(self.start_transitions[None, :])                       # (T, B, S)

        # ---- gold-path score (numerator): pure gather, plain JAX ----
        emis_at_tags = jnp.take_along_axis(emis, tags_t[:, :, None], axis=2)[:, :, 0]  # (T, B)
        trans_at = self.transitions[tags_t[:-1], tags_t[1:]]                           # (T-1, B)
        log_numerator = jnp.sum(emis_at_tags[0]) + jnp.sum(
            mask_f[1:] * (emis_at_tags[1:] + trans_at))

        # ---- log partition (denominator) via the Pallas kernel ----
        P = _round_up(S, 128)                       # tags live on the lane axis
        TB, Bp, TC, Tp = _pick_tiles(B, T - 1, P, jnp.dtype(EMIS_STREAM_DTYPE).itemsize)

        # exp-domain guard: exp(transitions - tmax) <= 1, padded with exact 0.0; the
        # subtracted tmax is folded back into the t>=1 emissions host-side.
        tmax = jnp.max(self.transitions)
        vinit_p = jnp.full((Bp, P), NEG, jnp.float32).at[:B, :S].set(emis[0])
        emis_p = jnp.full((Tp, Bp, P), NEG, EMIS_STREAM_DTYPE)
        emis_p = emis_p.at[:T - 1, :B, :S].set((emis[1:] + tmax).astype(EMIS_STREAM_DTYPE))
        lens_p = jnp.zeros((Bp, 1), jnp.int32).at[:B, 0].set(end_idx)
        expT_p = jnp.zeros((P, P), jnp.float32).at[:S, :S].set(
            jnp.exp(self.transitions - tmax))

        # keep the [:B] slice: padded batch rows hold finite garbage.
        log_denominator = _crf_log_partition(vinit_p, emis_p, lens_p, expT_p, TB, TC)[:B]
        return log_numerator - jnp.sum(log_denominator)


# ----------------------------------------------------------------------------- reference
def _reference_forward(crf, inputs, tags, mask):
    """Pure-JAX replica of the torch forward (builds the full potentials tensor)."""
    B, T, S = inputs.shape
    logits = jnp.transpose(inputs, (1, 0, 2)).astype(jnp.float32)
    mask_t = jnp.transpose(mask, (1, 0)).astype(jnp.int32)
    tags_t = jnp.transpose(tags, (1, 0)).astype(jnp.int32)
    mask_f = mask_t.astype(jnp.float32)

    # potentials exactly as torch _make_potentials(constrained=False)
    pot = logits[:, :, :, None] + crf.transitions.T[None, None, :, :]
    first = logits[0] + crf.start_transitions[None, :]
    pot = pot.at[0, :, :, 1:].set(-10000.0)
    pot = pot.at[0, :, :, 0].set(first)
    end_idx = jnp.sum(mask_t, axis=0) - 1
    at_end = (jnp.arange(T)[:, None] == end_idx[None, :]).astype(jnp.float32)
    pot = pot + at_end[:, :, None, None] * crf.end_transitions[None, None, :, None]

    V = jnp.zeros((B, S), jnp.float32)
    for t in range(T):
        lse = jax.scipy.special.logsumexp(pot[t] + V[:, None, :], axis=-1)
        V = mask_f[t][:, None] * lse + (1.0 - mask_f[t])[:, None] * V
    denom = jax.scipy.special.logsumexp(V, axis=-1)

    barange = jnp.arange(B)
    numer = jnp.sum(pot[0, barange, tags_t[0], jnp.zeros((B,), jnp.int32)])
    for t in range(1, T):
        numer = numer + jnp.sum(mask_f[t] * pot[t, barange, tags_t[t], tags_t[t - 1]])
    return numer - jnp.sum(denom)


# ----------------------------------------------------------------------------- main
if __name__ == "__main__":
    key = jax.random.PRNGKey(0)
    kp, kx, kt = jax.random.split(key, 3)

    B, T, S = 2, 8, 5
    crf = ConditionalRandomField(S, kp)

    inputs = jax.random.normal(kx, (B, T, S), jnp.float32)
    tags = jax.random.randint(kt, (B, T), 0, S, dtype=jnp.int32)
    lengths = jnp.array([T, 5], jnp.int32)
    mask = (jnp.arange(T)[None, :] < lengths[:, None]).astype(jnp.int32)

    out = jax.block_until_ready(crf.forward(inputs, tags, mask))
    ref = jax.block_until_ready(_reference_forward(crf, inputs, tags, mask))

    assert jnp.isfinite(out), "non-finite CRF log-likelihood"
    assert jnp.allclose(out, ref, atol=1e-2, rtol=1e-4), (out, ref)

    # TODO(synk): viterbi_tags (constrained hard-Viterbi decoding) is not part of
    # forward() and is not implemented here.
    print("KERNEL_OK")
</pallas_src>

<mosaic_0001>
module attributes {stable_mosaic.version = 11 : i64} {
  func.func @_crf_fwd_kernel(%arg0: i32, %arg1: i32, %arg2: memref<8x128xf32, #tpu.memory_space<vmem>>, %arg3: memref<8x8x128xf32, #tpu.memory_space<vmem>>, %arg4: memref<8x1xi32, #tpu.memory_space<vmem>>, %arg5: memref<128x128xf32, #tpu.memory_space<vmem>>, %arg6: memref<8x1xf32, #tpu.memory_space<vmem>>, %arg7: memref<8x128xf32, #tpu.memory_space<vmem>>) attributes {dimension_semantics = [#tpu.dimension_semantics<parallel>, #tpu.dimension_semantics<arbitrary>], iteration_bounds = array<i64: 1, 1>, scalar_prefetch = 0 : i64, scratch_operands = 1 : i64, tpu.core_type = #tpu.core_type<tc>, window_params = [{transform_indices = @transform_0, window_bounds = array<i64: 8, 128>}, {transform_indices = @transform_1, window_bounds = array<i64: 8, 8, 128>}, {transform_indices = @transform_2, window_bounds = array<i64: 8, 1>}, {pipeline_mode = #tpu.pipeline_mode<synchronous>, transform_indices = @transform_3, window_bounds = array<i64: 128, 128>}, {transform_indices = @transform_4, window_bounds = array<i64: 8, 1>}]} {
    %c0_i32 = arith.constant 0 : i32
    %0 = arith.cmpi eq, %arg1, %c0_i32 : i32
    %1 = arith.extui %0 : i1 to i32
    %c0_i32_0 = arith.constant 0 : i32
    %2 = arith.cmpi ne, %1, %c0_i32_0 : i32
    scf.if %2 {
      %c0_58 = arith.constant 0 : index
      %c0_59 = arith.constant 0 : index
      %186 = vector.load %arg2[%c0_58, %c0_59] : memref<8x128xf32, #tpu.memory_space<vmem>>, vector<8x128xf32>
      %c0_60 = arith.constant 0 : index
      %c0_61 = arith.constant 0 : index
      %187 = vector.load %arg7[%c0_60, %c0_61] : memref<8x128xf32, #tpu.memory_space<vmem>>, vector<8x128xf32>
      tpu.vector_store %arg7[%c0_60, %c0_61], %186 {strides = array<i32>} : memref<8x128xf32, #tpu.memory_space<vmem>>, vector<8x128xf32>,
    } else {
    }
    %c0 = arith.constant 0 : index
    %c0_1 = arith.constant 0 : index
    %3 = vector.load %arg5[%c0, %c0_1] : memref<128x128xf32, #tpu.memory_space<vmem>>, vector<128x128xf32>
    %c0_2 = arith.constant 0 : index
    %c0_3 = arith.constant 0 : index
    %4 = vector.load %arg4[%c0_2, %c0_3] : memref<8x1xi32, #tpu.memory_space<vmem>>, vector<8x1xi32>
    %c0_4 = arith.constant 0 : index
    %c0_5 = arith.constant 0 : index
    %5 = vector.load %arg7[%c0_4, %c0_5] : memref<8x128xf32, #tpu.memory_space<vmem>>, vector<8x128xf32>
    %c0_i32_6 = arith.constant 0 : i32
    %6 = arith.index_cast %c0_i32_6 : i32 to index
    %c0_7 = arith.constant 0 : index
    %c0_8 = arith.constant 0 : index
    %7 = vector.load %arg3[%6, %c0_7, %c0_8] : memref<8x8x128xf32, #tpu.memory_space<vmem>>, vector<1x8x128xf32>
    %8 = vector.shape_cast %7 : vector<1x8x128xf32> to vector<8x128xf32>
    %cst = arith.constant dense<0xFF800000> : vector<8xf32>
    %9 = vector.multi_reduction <maximumf>, %5, %cst [1] : vector<8x128xf32> to vector<8xf32>
    %10 = vector.shape_cast %9 : vector<8xf32> to vector<8x1xf32>
    %11 = vector.broadcast %10 : vector<8x1xf32> to vector<8x128xf32>
    %12 = arith.subf %5, %11 : vector<8x128xf32>
    %13 = math.exp %12 : vector<8x128xf32>
    %cst_9 = arith.constant dense<0.000000e+00> : vector<8x128xf32>
    %14 = tpu.matmul %13, %3, %cst_9 {dimension_numbers = #tpu.dot_dimension_numbers<[1], [0], [0], [1], [0, 0, 1, 1], [], []>} : vector<8x128xf32>, vector<128x128xf32>, vector<8x128xf32> -> vector<8x128xf32>
    %cst_10 = arith.constant 1.000000e-30 : f32
    %15 = vector.broadcast %cst_10 : f32 to vector<8x128xf32>
    %16 = arith.maximumf %14, %15 : vector<8x128xf32>
    %17 = math.log %16 : vector<8x128xf32>
    %18 = vector.broadcast %10 : vector<8x1xf32> to vector<8x128xf32>
    %19 = arith.addf %18, %17 : vector<8x128xf32>
    %20 = arith.addf %19, %8 : vector<8x128xf32>
    %c8_i32 = arith.constant 8 : i32
    %21 = arith.muli %arg1, %c8_i32 : i32
    %22 = arith.addi %21, %c0_i32_6 : i32
    %23 = vector.broadcast %22 : i32 to vector<8x1xi32>
    %24 = arith.cmpi slt, %23, %4 : vector<8x1xi32>
    %25 = vector.shape_cast %24 : vector<8x1xi1> to vector<8x1xi1>
    %26 = vector.broadcast %25 : vector<8x1xi1> to vector<8x128xi1>
    %27 = arith.select %26, %20, %5 : vector<8x128xi1>, vector<8x128xf32>
    %c1_i32 = arith.constant 1 : i32
    %28 = arith.index_cast %c1_i32 : i32 to index
    %c0_11 = arith.constant 0 : index
    %c0_12 = arith.constant 0 : index
    %29 = vector.load %arg3[%28, %c0_11, %c0_12] : memref<8x8x128xf32, #tpu.memory_space<vmem>>, vector<1x8x128xf32>
    %30 = vector.shape_cast %29 : vector<1x8x128xf32> to vector<8x128xf32>
    %cst_13 = arith.constant dense<0xFF800000> : vector<8xf32>
    %31 = vector.multi_reduction <maximumf>, %27, %cst_13 [1] : vector<8x128xf32> to vector<8xf32>
    %32 = vector.shape_cast %31 : vector<8xf32> to vector<8x1xf32>
    %33 = vector.broadcast %32 : vector<8x1xf32> to vector<8x128xf32>
    %34 = arith.subf %27, %33 : vector<8x128xf32>
    %35 = math.exp %34 : vector<8x128xf32>
    %cst_14 = arith.constant dense<0.000000e+00> : vector<8x128xf32>
    %36 = tpu.matmul %35, %3, %cst_14 {dimension_numbers = #tpu.dot_dimension_numbers<[1], [0], [0], [1], [0, 0, 1, 1], [], []>} : vector<8x128xf32>, vector<128x128xf32>, vector<8x128xf32> -> vector<8x128xf32>
    %cst_15 = arith.constant 1.000000e-30 : f32
    %37 = vector.broadcast %cst_15 : f32 to vector<8x128xf32>
    %38 = arith.maximumf %36, %37 : vector<8x128xf32>
    %39 = math.log %38 : vector<8x128xf32>
    %40 = vector.broadcast %32 : vector<8x1xf32> to vector<8x128xf32>
    %41 = arith.addf %40, %39 : vector<8x128xf32>
    %42 = arith.addf %41, %30 : vector<8x128xf32>
    %c8_i32_16 = arith.constant 8 : i32
    %43 = arith.muli %arg1, %c8_i32_16 : i32
    %44 = arith.addi %43, %c1_i32 : i32
    %45 = vector.broadcast %44 : i32 to vector<8x1xi32>
    %46 = arith.cmpi slt, %45, %4 : vector<8x1xi32>
    %47 = vector.shape_cast %46 : vector<8x1xi1> to vector<8x1xi1>
    %48 = vector.broadcast %47 : vector<8x1xi1> to vector<8x128xi1>
    %49 = arith.select %48, %42, %27 : vector<8x128xi1>, vector<8x128xf32>
    %c2_i32 = arith.constant 2 : i32
    %50 = arith.index_cast %c2_i32 : i32 to index
    %c0_17 = arith.constant 0 : index
    %c0_18 = arith.constant 0 : index
    %51 = vector.load %arg3[%50, %c0_17, %c0_18] : memref<8x8x128xf32, #tpu.memory_space<vmem>>, vector<1x8x128xf32>
    %52 = vector.shape_cast %51 : vector<1x8x128xf32> to vector<8x128xf32>
    %cst_19 = arith.constant dense<0xFF800000> : vector<8xf32>
    %53 = vector.multi_reduction <maximumf>, %49, %cst_19 [1] : vector<8x128xf32> to vector<8xf32>
    %54 = vector.shape_cast %53 : vector<8xf32> to vector<8x1xf32>
    %55 = vector.broadcast %54 : vector<8x1xf32> to vector<8x128xf32>
    %56 = arith.subf %49, %55 : vector<8x128xf32>
    %57 = math.exp %56 : vector<8x128xf32>
    %cst_20 = arith.constant dense<0.000000e+00> : vector<8x128xf32>
    %58 = tpu.matmul %57, %3, %cst_20 {dimension_numbers = #tpu.dot_dimension_numbers<[1], [0], [0], [1], [0, 0, 1, 1], [], []>} : vector<8x128xf32>, vector<128x128xf32>, vector<8x128xf32> -> vector<8x128xf32>
    %cst_21 = arith.constant 1.000000e-30 : f32
    %59 = vector.broadcast %cst_21 : f32 to vector<8x128xf32>
    %60 = arith.maximumf %58, %59 : vector<8x128xf32>
    %61 = math.log %60 : vector<8x128xf32>
    %62 = vector.broadcast %54 : vector<8x1xf32> to vector<8x128xf32>
    %63 = arith.addf %62, %61 : vector<8x128xf32>
    %64 = arith.addf %63, %52 : vector<8x128xf32>
    %c8_i32_22 = arith.constant 8 : i32
    %65 = arith.muli %arg1, %c8_i32_22 : i32
    %66 = arith.addi %65, %c2_i32 : i32
    %67 = vector.broadcast %66 : i32 to vector<8x1xi32>
    %68 = arith.cmpi slt, %67, %4 : vector<8x1xi32>
    %69 = vector.shape_cast %68 : vector<8x1xi1> to vector<8x1xi1>
    %70 = vector.broadcast %69 : vector<8x1xi1> to vector<8x128xi1>
    %71 = arith.select %70, %64, %49 : vector<8x128xi1>, vector<8x128xf32>
    %c3_i32 = arith.constant 3 : i32
    %72 = arith.index_cast %c3_i32 : i32 to index
    %c0_23 = arith.constant 0 : index
    %c0_24 = arith.constant 0 : index
    %73 = vector.load %arg3[%72, %c0_23, %c0_24] : memref<8x8x128xf32, #tpu.memory_space<vmem>>, vector<1x8x128xf32>
    %74 = vector.shape_cast %73 : vector<1x8x128xf32> to vector<8x128xf32>
    %cst_25 = arith.constant dense<0xFF800000> : vector<8xf32>
    %75 = vector.multi_reduction <maximumf>, %71, %cst_25 [1] : vector<8x128xf32> to vector<8xf32>
    %76 = vector.shape_cast %75 : vector<8xf32> to vector<8x1xf32>
    %77 = vector.broadcast %76 : vector<8x1xf32> to vector<8x128xf32>
    %78 = arith.subf %71, %77 : vector<8x128xf32>
    %79 = math.exp %78 : vector<8x128xf32>
    %cst_26 = arith.constant dense<0.000000e+00> : vector<8x128xf32>
    %80 = tpu.matmul %79, %3, %cst_26 {dimension_numbers = #tpu.dot_dimension_numbers<[1], [0], [0], [1], [0, 0, 1, 1], [], []>} : vector<8x128xf32>, vector<128x128xf32>, vector<8x128xf32> -> vector<8x128xf32>
    %cst_27 = arith.constant 1.000000e-30 : f32
    %81 = vector.broadcast %cst_27 : f32 to vector<8x128xf32>
    %82 = arith.maximumf %80, %81 : vector<8x128xf32>
    %83 = math.log %82 : vector<8x128xf32>
    %84 = vector.broadcast %76 : vector<8x1xf32> to vector<8x128xf32>
    %85 = arith.addf %84, %83 : vector<8x128xf32>
    %86 = arith.addf %85, %74 : vector<8x128xf32>
    %c8_i32_28 = arith.constant 8 : i32
    %87 = arith.muli %arg1, %c8_i32_28 : i32
    %88 = arith.addi %87, %c3_i32 : i32
    %89 = vector.broadcast %88 : i32 to vector<8x1xi32>
    %90 = arith.cmpi slt, %89, %4 : vector<8x1xi32>
    %91 = vector.shape_cast %90 : vector<8x1xi1> to vector<8x1xi1>
    %92 = vector.broadcast %91 : vector<8x1xi1> to vector<8x128xi1>
    %93 = arith.select %92, %86, %71 : vector<8x128xi1>, vector<8x128xf32>
    %c4_i32 = arith.constant 4 : i32
    %94 = arith.index_cast %c4_i32 : i32 to index
    %c0_29 = arith.constant 0 : index
    %c0_30 = arith.constant 0 : index
    %95 = vector.load %arg3[%94, %c0_29, %c0_30] : memref<8x8x128xf32, #tpu.memory_space<vmem>>, vector<1x8x128xf32>
    %96 = vector.shape_cast %95 : vector<1x8x128xf32> to vector<8x128xf32>
    %cst_31 = arith.constant dense<0xFF800000> : vector<8xf32>
    %97 = vector.multi_reduction <maximumf>, %93, %cst_31 [1] : vector<8x128xf32> to vector<8xf32>
    %98 = vector.shape_cast %97 : vector<8xf32> to vector<8x1xf32>
    %99 = vector.broadcast %98 : vector<8x1xf32> to vector<8x128xf32>
    %100 = arith.subf %93, %99 : vector<8x128xf32>
    %101 = math.exp %100 : vector<8x128xf32>
    %cst_32 = arith.constant dense<0.000000e+00> : vector<8x128xf32>
    %102 = tpu.matmul %101, %3, %cst_32 {dimension_numbers = #tpu.dot_dimension_numbers<[1], [0], [0], [1], [0, 0, 1, 1], [], []>} : vector<8x128xf32>, vector<128x128xf32>, vector<8x128xf32> -> vector<8x128xf32>
    %cst_33 = arith.constant 1.000000e-30 : f32
    %103 = vector.broadcast %cst_33 : f32 to vector<8x128xf32>
    %104 = arith.maximumf %102, %103 : vector<8x128xf32>
    %105 = math.log %104 : vector<8x128xf32>
    %106 = vector.broadcast %98 : vector<8x1xf32> to vector<8x128xf32>
    %107 = arith.addf %106, %105 : vector<8x128xf32>
    %108 = arith.addf %107, %96 : vector<8x128xf32>
    %c8_i32_34 = arith.constant 8 : i32
    %109 = arith.muli %arg1, %c8_i32_34 : i32
    %110 = arith.addi %109, %c4_i32 : i32
    %111 = vector.broadcast %110 : i32 to vector<8x1xi32>
    %112 = arith.cmpi slt, %111, %4 : vector<8x1xi32>
    %113 = vector.shape_cast %112 : vector<8x1xi1> to vector<8x1xi1>
    %114 = vector.broadcast %113 : vector<8x1xi1> to vector<8x128xi1>
    %115 = arith.select %114, %108, %93 : vector<8x128xi1>, vector<8x128xf32>
    %c5_i32 = arith.constant 5 : i32
    %116 = arith.index_cast %c5_i32 : i32 to index
    %c0_35 = arith.constant 0 : index
    %c0_36 = arith.constant 0 : index
    %117 = vector.load %arg3[%116, %c0_35, %c0_36] : memref<8x8x128xf32, #tpu.memory_space<vmem>>, vector<1x8x128xf32>
    %118 = vector.shape_cast %117 : vector<1x8x128xf32> to vector<8x128xf32>
    %cst_37 = arith.constant dense<0xFF800000> : vector<8xf32>
    %119 = vector.multi_reduction <maximumf>, %115, %cst_37 [1] : vector<8x128xf32> to vector<8xf32>
    %120 = vector.shape_cast %119 : vector<8xf32> to vector<8x1xf32>
    %121 = vector.broadcast %120 : vector<8x1xf32> to vector<8x128xf32>
    %122 = arith.subf %115, %121 : vector<8x128xf32>
    %123 = math.exp %122 : vector<8x128xf32>
    %cst_38 = arith.constant dense<0.000000e+00> : vector<8x128xf32>
    %124 = tpu.matmul %123, %3, %cst_38 {dimension_numbers = #tpu.dot_dimension_numbers<[1], [0], [0], [1], [0, 0, 1, 1], [], []>} : vector<8x128xf32>, vector<128x128xf32>, vector<8x128xf32> -> vector<8x128xf32>
    %cst_39 = arith.constant 1.000000e-30 : f32
    %125 = vector.broadcast %cst_39 : f32 to vector<8x128xf32>
    %126 = arith.maximumf %124, %125 : vector<8x128xf32>
    %127 = math.log %126 : vector<8x128xf32>
    %128 = vector.broadcast %120 : vector<8x1xf32> to vector<8x128xf32>
    %129 = arith.addf %128, %127 : vector<8x128xf32>
    %130 = arith.addf %129, %118 : vector<8x128xf32>
    %c8_i32_40 = arith.constant 8 : i32
    %131 = arith.muli %arg1, %c8_i32_40 : i32
    %132 = arith.addi %131, %c5_i32 : i32
    %133 = vector.broadcast %132 : i32 to vector<8x1xi32>
    %134 = arith.cmpi slt, %133, %4 : vector<8x1xi32>
    %135 = vector.shape_cast %134 : vector<8x1xi1> to vector<8x1xi1>
    %136 = vector.broadcast %135 : vector<8x1xi1> to vector<8x128xi1>
    %137 = arith.select %136, %130, %115 : vector<8x128xi1>, vector<8x128xf32>
    %c6_i32 = arith.constant 6 : i32
    %138 = arith.index_cast %c6_i32 : i32 to index
    %c0_41 = arith.constant 0 : index
    %c0_42 = arith.constant 0 : index
    %139 = vector.load %arg3[%138, %c0_41, %c0_42] : memref<8x8x128xf32, #tpu.memory_space<vmem>>, vector<1x8x128xf32>
    %140 = vector.shape_cast %139 : vector<1x8x128xf32> to vector<8x128xf32>
    %cst_43 = arith.constant dense<0xFF800000> : vector<8xf32>
    %141 = vector.multi_reduction <maximumf>, %137, %cst_43 [1] : vector<8x128xf32> to vector<8xf32>
    %142 = vector.shape_cast %141 : vector<8xf32> to vector<8x1xf32>
    %143 = vector.broadcast %142 : vector<8x1xf32> to vector<8x128xf32>
    %144 = arith.subf %137, %143 : vector<8x128xf32>
    %145 = math.exp %144 : vector<8x128xf32>
    %cst_44 = arith.constant dense<0.000000e+00> : vector<8x128xf32>
    %146 = tpu.matmul %145, %3, %cst_44 {dimension_numbers = #tpu.dot_dimension_numbers<[1], [0], [0], [1], [0, 0, 1, 1], [], []>} : vector<8x128xf32>, vector<128x128xf32>, vector<8x128xf32> -> vector<8x128xf32>
    %cst_45 = arith.constant 1.000000e-30 : f32
    %147 = vector.broadcast %cst_45 : f32 to vector<8x128xf32>
    %148 = arith.maximumf %146, %147 : vector<8x128xf32>
    %149 = math.log %148 : vector<8x128xf32>
    %150 = vector.broadcast %142 : vector<8x1xf32> to vector<8x128xf32>
    %151 = arith.addf %150, %149 : vector<8x128xf32>
    %152 = arith.addf %151, %140 : vector<8x128xf32>
    %c8_i32_46 = arith.constant 8 : i32
    %153 = arith.muli %arg1, %c8_i32_46 : i32
    %154 = arith.addi %153, %c6_i32 : i32
    %155 = vector.broadcast %154 : i32 to vector<8x1xi32>
    %156 = arith.cmpi slt, %155, %4 : vector<8x1xi32>
    %157 = vector.shape_cast %156 : vector<8x1xi1> to vector<8x1xi1>
    %158 = vector.broadcast %157 : vector<8x1xi1> to vector<8x128xi1>
    %159 = arith.select %158, %152, %137 : vector<8x128xi1>, vector<8x128xf32>
    %c7_i32 = arith.constant 7 : i32
    %160 = arith.index_cast %c7_i32 : i32 to index
    %c0_47 = arith.constant 0 : index
    %c0_48 = arith.constant 0 : index
    %161 = vector.load %arg3[%160, %c0_47, %c0_48] : memref<8x8x128xf32, #tpu.memory_space<vmem>>, vector<1x8x128xf32>
    %162 = vector.shape_cast %161 : vector<1x8x128xf32> to vector<8x128xf32>
    %cst_49 = arith.constant dense<0xFF800000> : vector<8xf32>
    %163 = vector.multi_reduction <maximumf>, %159, %cst_49 [1] : vector<8x128xf32> to vector<8xf32>
    %164 = vector.shape_cast %163 : vector<8xf32> to vector<8x1xf32>
    %165 = vector.broadcast %164 : vector<8x1xf32> to vector<8x128xf32>
    %166 = arith.subf %159, %165 : vector<8x128xf32>
    %167 = math.exp %166 : vector<8x128xf32>
    %cst_50 = arith.constant dense<0.000000e+00> : vector<8x128xf32>
    %168 = tpu.matmul %167, %3, %cst_50 {dimension_numbers = #tpu.dot_dimension_numbers<[1], [0], [0], [1], [0, 0, 1, 1], [], []>} : vector<8x128xf32>, vector<128x128xf32>, vector<8x128xf32> -> vector<8x128xf32>
    %cst_51 = arith.constant 1.000000e-30 : f32
    %169 = vector.broadcast %cst_51 : f32 to vector<8x128xf32>
    %170 = arith.maximumf %168, %169 : vector<8x128xf32>
    %171 = math.log %170 : vector<8x128xf32>
    %172 = vector.broadcast %164 : vector<8x1xf32> to vector<8x128xf32>
    %173 = arith.addf %172, %171 : vector<8x128xf32>
    %174 = arith.addf %173, %162 : vector<8x128xf32>
    %c8_i32_52 = arith.constant 8 : i32
    %175 = arith.muli %arg1, %c8_i32_52 : i32
    %176 = arith.addi %175, %c7_i32 : i32
    %177 = vector.broadcast %176 : i32 to vector<8x1xi32>
    %178 = arith.cmpi slt, %177, %4 : vector<8x1xi32>
    %179 = vector.shape_cast %178 : vector<8x1xi1> to vector<8x1xi1>
    %180 = vector.broadcast %179 : vector<8x1xi1> to vector<8x128xi1>
    %181 = arith.select %180, %174, %159 : vector<8x128xi1>, vector<8x128xf32>
    %c8_i32_53 = arith.constant 8 : i32
    %c0_54 = arith.constant 0 : index
    %c0_55 = arith.constant 0 : index
    %182 = vector.load %arg7[%c0_54, %c0_55] : memref<8x128xf32, #tpu.memory_space<vmem>>, vector<8x128xf32>
    tpu.vector_store %arg7[%c0_54, %c0_55], %181 {strides = array<i32>} : memref<8x128xf32, #tpu.memory_space<vmem>>, vector<8x128xf32>,
    %c0_i32_56 = arith.constant 0 : i32
    %183 = arith.cmpi eq, %arg1, %c0_i32_56 : i32
    %184 = arith.extui %183 : i1 to i32
    %c0_i32_57 = arith.constant 0 : i32
    %185 = arith.cmpi ne, %184, %c0_i32_57 : i32
    scf.if %185 {
      %c0_58 = arith.constant 0 : index
      %c0_59 = arith.constant 0 : index
      %186 = vector.load %arg7[%c0_58, %c0_59] : memref<8x128xf32, #tpu.memory_space<vmem>>, vector<8x128xf32>
      %cst_60 = arith.constant dense<0xFF800000> : vector<8xf32>
      %187 = vector.multi_reduction <maximumf>, %186, %cst_60 [1] : vector<8x128xf32> to vector<8xf32>
      %188 = vector.shape_cast %187 : vector<8xf32> to vector<8x1xf32>
      %189 = vector.broadcast %188 : vector<8x1xf32> to vector<8x128xf32>
      %190 = arith.subf %186, %189 : vector<8x128xf32>
      %191 = math.exp %190 : vector<8x128xf32>
      %cst_61 = arith.constant dense<0.000000e+00> : vector<8xf32>
      %192 = vector.multi_reduction <add>, %191, %cst_61 [1] : vector<8x128xf32> to vector<8xf32>
      %193 = vector.shape_cast %192 : vector<8xf32> to vector<8x1xf32>
      %194 = math.log %193 : vector<8x1xf32>
      %195 = arith.addf %188, %194 : vector<8x1xf32>
      %c0_62 = arith.constant 0 : index
      %c0_63 = arith.constant 0 : index
      %196 = vector.load %arg6[%c0_62, %c0_63] : memref<8x1xf32, #tpu.memory_space<vmem>>, vector<8x1xf32>
      tpu.vector_store %arg6[%c0_62, %c0_63], %195 {strides = array<i32>} : memref<8x1xf32, #tpu.memory_space<vmem>>, vector<8x1xf32>,
    } else {
    }
    return
  }
  func.func @transform_0(%arg0: i32, %arg1: i32) -> (i32, i32) {
    %c0_i32 = arith.constant 0 : i32
    %c0_i32_0 = arith.constant 0 : i32
    return %arg0, %c0_i32 : i32, i32
  }
  func.func @transform_1(%arg0: i32, %arg1: i32) -> (i32, i32, i32) {
    %c0_i32 = arith.constant 0 : i32
    %c0_i32_0 = arith.constant 0 : i32
    return %arg1, %arg0, %c0_i32 : i32, i32, i32
  }
  func.func @transform_2(%arg0: i32, %arg1: i32) -> (i32, i32) {
    %c0_i32 = arith.constant 0 : i32
    %c0_i32_0 = arith.constant 0 : i32
    return %arg0, %c0_i32 : i32, i32
  }
  func.func @transform_3(%arg0: i32, %arg1: i32) -> (i32, i32) {
    %c0_i32 = arith.constant 0 : i32
    %c0_i32_0 = arith.constant 0 : i32
    %c0_i32_1 = arith.constant 0 : i32
    return %c0_i32, %c0_i32_0 : i32, i32
  }
  func.func @transform_4(%arg0: i32, %arg1: i32) -> (i32, i32) {
    %c0_i32 = arith.constant 0 : i32
    %c0_i32_0 = arith.constant 0 : i32
    return %arg0, %c0_i32 : i32, i32
  }
}

</mosaic_0001>

<llo_original>
// kernel: tpu_custom_call.1
$region0: #{tpu_custom_call.1}
  #allocation0 [shape = 'u32[]', space=smem, size = 0x4, offset = 0x4, fixed_abs, tag = 'smem constant byte address 0x4 - core index']
  #allocation1 [shape = 'u32[144,128]{1,0:T(1,128)}', space=vmem, size = 0x12000, scoped, tag = 'internal scratch']
  #allocation2 [shape = 'f32[8,128]{1,0:T(8,128)}', space=vmem, size = 0x1000, scoped, tag = 'scratch operand']
  %s0 = inlined_call_operand.vmem [shape: f32[8,128], index: 0, kind: input, shape index: {}]
  %s1 = inlined_call_operand.hbm [shape: f32[8,8,128], index: 1, kind: input, shape index: {}]
  %s2 = inlined_call_operand.vmem [shape: s32[8,1], index: 2, kind: input, shape index: {}]
  %s3 = inlined_call_operand.hbm [shape: f32[128,128], index: 3, kind: input, shape index: {}]
  %s4 = inlined_call_operand.vmem [shape: f32[8,1], index: 4, kind: output, shape index: {}]
  %s5 = sld [smem:[#allocation0]]
  $region42: #{tpu_custom_call.1} parent=0
    _
  %s7 = ssub.s32 1, %s5
  %s8 = scalar_select 0, %s7, %s5
  $region1: #{tpu_custom_call.1} parent=0
    #allocation3 [shape = 'u8[32768]{0}', space=vmem, size = 0x8000, scoped, tag = 'input window, operand 1, single buffered']
    #allocation4 [shape = 's32[1]{0}', space=sflag, size = 0x4, scoped, tag = 'scoped memory for tpu_custom_call.1']
    #allocation5 [shape = 'u8[65536]{0}', space=vmem, size = 0x10000, scoped, tag = 'input window, operand 3, single buffered']
    #allocation6 [shape = 's32[1]{0}', space=sflag, size = 0x4, scoped, tag = 'scoped memory for tpu_custom_call.1']
    %9 = vsyncpa [#allocation4], 0
    %10 = vsyncpa [#allocation6], 0
    // Predicated region
    $region2: #{tpu_custom_call.1} parent=1 // pred_check
      _
    $region3: #{tpu_custom_call.1} parent=1 // pred_check_branch
      %12 = sbr.rel (0) target = $region5
    $region4: #{tpu_custom_call.1} parent=1 // pred_region
      _
    $region5: #{tpu_custom_call.1} parent=1 // pred_fallthru
      _
    // Predicated region
    $region6: #{tpu_custom_call.1} parent=1 // pred_check
      _
    $region7: #{tpu_custom_call.1} parent=1 // pred_check_branch
      %14 = sbr.rel (0) target = $region9
    $region8: #{tpu_custom_call.1} parent=1 // pred_region
      %s16 = ssub.s32 1024, 1024
      %17 = vsyncadd [#allocation4], %s16
      %s18 = sshll.u32 [#allocation3], 4
      %s19 = int_to_ptr.vmem [resolvable:$true] %s18
      %24 = dma.hbm_to_vmem [thread:$0]  %s1, 1024, %s19, [#allocation4], 128, 128, 8
    $region9: #{tpu_custom_call.1} parent=1 // pred_fallthru
      _
    // Predicated region
    $region10: #{tpu_custom_call.1} parent=1 // pred_check
      _
    $region11: #{tpu_custom_call.1} parent=1 // pred_check_branch
      %26 = sbr.rel (0) target = $region13
    $region12: #{tpu_custom_call.1} parent=1 // pred_region
      _
    $region13: #{tpu_custom_call.1} parent=1 // pred_fallthru
      _
    // Predicated region
    $region14: #{tpu_custom_call.1} parent=1 // pred_check
      _
    $region15: #{tpu_custom_call.1} parent=1 // pred_check_branch
      %28 = sbr.rel (0) target = $region17
    $region16: #{tpu_custom_call.1} parent=1 // pred_region
      %s30 = ssub.s32 2048, 2048
      %31 = vsyncadd [#allocation6], %s30
      %s32 = sshll.u32 [#allocation5], 4
      %s33 = int_to_ptr.vmem [resolvable:$true] %s32
      %38 = dma.hbm_to_vmem [thread:$0]  %s3, 2048, %s33, [#allocation6], 128, 128, 8
    $region17: #{tpu_custom_call.1} parent=1 // pred_fallthru
      _
    // Predicated region
    $region18: #{tpu_custom_call.1} parent=1 // pred_check
      _
    $region19: #{tpu_custom_call.1} parent=1 // pred_check_branch
      %40 = sbr.rel (0) target = $region21
    $region20: #{tpu_custom_call.1} parent=1 // pred_region
      %41 = dma.done [#allocation4], 1024
    $region21: #{tpu_custom_call.1} parent=1 // pred_fallthru
      _
    // Predicated region
    $region22: #{tpu_custom_call.1} parent=1 // pred_check
      _
    $region23: #{tpu_custom_call.1} parent=1 // pred_check_branch
      %43 = sbr.rel (0) target = $region25
    $region24: #{tpu_custom_call.1} parent=1 // pred_region
      %44 = dma.done [#allocation6], 2048
    $region25: #{tpu_custom_call.1} parent=1 // pred_fallthru
      _
    %p45 = scmp.eq.s32.totalorder 0, 0
    // Predicated region
    $region26: #{tpu_custom_call.1} parent=1 // pred_check
      %p46 = pneg %p45
    $region27: #{tpu_custom_call.1} parent=1 // pred_check_branch
      %48 = sbr.rel (%p46) target = $region29
    $region28: #{tpu_custom_call.1} parent=1 // pred_region
      %v49 = vld [vmem:[%s0] sm:$0xff]
      %50 = vst [vmem:[#allocation2] sm:$0xff] %v49
    $region29: #{tpu_custom_call.1} parent=1 // pred_fallthru
      _
    %v51 = vld [vmem:[#allocation5] sm:$0xff]
    %v52 = vld [vmem:[#allocation5 + $0x8] sm:$0xff]
    %v53 = vld [vmem:[#allocation5 + $0x10] sm:$0xff]
    %v54 = vld [vmem:[#allocation5 + $0x18] sm:$0xff]
    %v55 = vld [vmem:[#allocation5 + $0x20] sm:$0xff]
    %v56 = vld [vmem:[#allocation5 + $0x28] sm:$0xff]
    %v57 = vld [vmem:[#allocation5 + $0x30] sm:$0xff]
    %v58 = vld [vmem:[#allocation5 + $0x38] sm:$0xff]
    %v59 = vld [vmem:[#allocation5 + $0x40] sm:$0xff]
    %v60 = vld [vmem:[#allocation5 + $0x48] sm:$0xff]
    %v61 = vld [vmem:[#allocation5 + $0x50] sm:$0xff]
    %v62 = vld [vmem:[#allocation5 + $0x58] sm:$0xff]
    %v63 = vld [vmem:[#allocation5 + $0x60] sm:$0xff]
    %v64 = vld [vmem:[#allocation5 + $0x68] sm:$0xff]
    %v65 = vld [vmem:[#allocation5 + $0x70] sm:$0xff]
    %v66 = vld [vmem:[#allocation5 + $0x78] sm:$0xff]
    %v67 = vld [vmem:[%s2] sm:$0xff]
    %v68 = vld [vmem:[#allocation2] sm:$0xff]
    %v69 = vld [vmem:[#allocation3] sm:$0xff]
    %70 = vmax.xlane.f32.xlu0 %v68
    %v71 = vpop.xlane.xlu0 %70
    %v72 = vsub.f32 %v68, %v71
    %v73 = vmul.f32 %v72, 1.442695
    %v74 = vpow.pop %v73
    %75 = vmatprep.subr.mxu0 0.0
    %76 = vmatpush1.msra.mxu0 %v51
    %77 = vmatprep.subr.mxu0 0.0
    %78 = vmatpush1.msra.mxu0 %v52
    %79 = vmatprep.subr.mxu0 0.0
    %80 = vmatpush1.msra.mxu0 %v53
    %81 = vmatprep.subr.mxu0 0.0
    %82 = vmatpush1.msra.mxu0 %v54
    %83 = vmatprep.subr.mxu0 0.0
    %84 = vmatpush1.msra.mxu0 %v55
    %85 = vmatprep.subr.mxu0 0.0
    %86 = vmatpush1.msra.mxu0 %v56
    %87 = vmatprep.subr.mxu0 0.0
    %88 = vmatpush1.msra.mxu0 %v57
    %89 = vmatprep.subr.mxu0 0.0
    %90 = vmatpush1.msra.mxu0 %v58
    %91 = vmatprep.subr.mxu0 0.0
    %92 = vmatpush1.msra.mxu0 %v59
    %93 = vmatprep.subr.mxu0 0.0
    %94 = vmatpush1.msra.mxu0 %v60
    %95 = vmatprep.subr.mxu0 0.0
    %96 = vmatpush1.msra.mxu0 %v61
    %97 = vmatprep.subr.mxu0 0.0
    %98 = vmatpush1.msra.mxu0 %v62
    %99 = vmatprep.subr.mxu0 0.0
    %100 = vmatpush1.msra.mxu0 %v63
    %101 = vmatprep.subr.mxu0 0.0
    %102 = vmatpush1.msra.mxu0 %v64
    %103 = vmatprep.subr.mxu0 0.0
    %104 = vmatpush1.msra.mxu0 %v65
    %105 = vmatprep.subr.mxu0 0.0
    %106 = vmatpush1.msra.mxu0 %v66
    %107 = vmatprep.subr.mxu0 0.0
    %108 = vmatpush1.msra.mxu0 0.0
    %109 = vmatprep.subr.mxu0 0.0
    %110 = vmatpush1.msra.mxu0 0.0
    %111 = vmatprep.subr.mxu0 0.0
    %112 = vmatpush1.msra.mxu0 0.0
    %113 = vmatprep.subr.mxu0 0.0
    %114 = vmatpush1.msra.mxu0 0.0
    %115 = vmatprep.subr.mxu0 0.0
    %116 = vmatpush1.msra.mxu0 0.0
    %117 = vmatprep.subr.mxu0 0.0
    %118 = vmatpush1.msra.mxu0 0.0
    %119 = vmatprep.subr.mxu0 0.0
    %120 = vmatpush1.msra.mxu0 0.0
    %121 = vmatprep.subr.mxu0 0.0
    %122 = vmatpush1.msra.mxu0 0.0
    %123 = vmatprep.subr.mxu0 0.0
    %124 = vmatpush1.msra.mxu0 0.0
    %125 = vmatprep.subr.mxu0 0.0
    %126 = vmatpush1.msra.mxu0 0.0
    %127 = vmatprep.subr.mxu0 0.0
    %128 = vmatpush1.msra.mxu0 0.0
    %129 = vmatprep.subr.mxu0 0.0
    %130 = vmatpush1.msra.mxu0 0.0
    %131 = vmatprep.subr.mxu0 0.0
    %132 = vmatpush1.msra.mxu0 0.0
    %133 = vmatprep.subr.mxu0 0.0
    %134 = vmatpush1.msra.mxu0 0.0
    %135 = vmatprep.subr.mxu0 0.0
    %136 = vmatpush1.msra.mxu0 0.0
    %137 = vmatprep.subr.mxu0 0.0
    %138 = vmatpush1.msra.mxu0 0.0
    %139 = vmatprep.mubr.f32.mxu0 0.0
    %140 = vmatmul.mubr.f32.gmra.mrb[0].mxu0 %v74
    %v141 = vpop.f32.mrb[0].mxu0
    %v142 = vadd.f32 0.0, %v141
    %v143 = vpop.f32.mrb[0].mxu0
    %144 = vdwg.mxu0
    %v145 = vmax.f32 %v142, 1e-30
    %v146 = vlog2.pop %v145
    %v147 = vmul.f32 %v146, 0.6931472
    %v148 = vadd.f32 %v71, %v147
    %v149 = vadd.f32 %v148, %v69
    %s150 = smul.u32 0, 8
    %v151 = vstv %s150
    %vm152 = vcmp.lt.s32.totalorder %v151, %v67
    %v153 = vsel %vm152, 1, 0
    %154 = vset.pattern.permute.xlu0 0
    %155 = vperm.xlu0 %154, %v153
    %v156 = vpop.permute.xlu0 %155
    %vm157 = vcmp.eq.s32.totalorder %v156, 1
    %v158 = vsel %vm157, %v149, %v68
    %s159 = scalar_lea.vmem [#allocation3], 8
    %v160 = vld [vmem:[%s159] sm:$0xff]
    %161 = vmax.xlane.f32.xlu0 %v158
    %v162 = vpop.xlane.xlu0 %161
    %v163 = vsub.f32 %v158, %v162
    %v164 = vmul.f32 %v163, 1.442695
    %v165 = vpow.pop %v164
    %166 = vmatprep.subr.mxu0 0.0
    %167 = vmatpush1.msra.mxu0 %v51
    %168 = vmatprep.subr.mxu0 0.0
    %169 = vmatpush1.msra.mxu0 %v52
    %170 = vmatprep.subr.mxu0 0.0
    %171 = vmatpush1.msra.mxu0 %v53
    %172 = vmatprep.subr.mxu0 0.0
    %173 = vmatpush1.msra.mxu0 %v54
    %174 = vmatprep.subr.mxu0 0.0
    %175 = vmatpush1.msra.mxu0 %v55
    %176 = vmatprep.subr.mxu0 0.0
    %177 = vmatpush1.msra.mxu0 %v56
    %178 = vmatprep.subr.mxu0 0.0
    %179 = vmatpush1.msra.mxu0 %v57
    %180 = vmatprep.subr.mxu0 0.0
    %181 = vmatpush1.msra.mxu0 %v58
    %182 = vmatprep.subr.mxu0 0.0
    %183 = vmatpush1.msra.mxu0 %v59
    %184 = vmatprep.subr.mxu0 0.0
    %185 = vmatpush1.msra.mxu0 %v60
    %186 = vmatprep.subr.mxu0 0.0
    %187 = vmatpush1.msra.mxu0 %v61
    %188 = vmatprep.subr.mxu0 0.0
    %189 = vmatpush1.msra.mxu0 %v62
    %190 = vmatprep.subr.mxu0 0.0
    %191 = vmatpush1.msra.mxu0 %v63
    %192 = vmatprep.subr.mxu0 0.0
    %193 = vmatpush1.msra.mxu0 %v64
    %194 = vmatprep.subr.mxu0 0.0
    %195 = vmatpush1.msra.mxu0 %v65
    %196 = vmatprep.subr.mxu0 0.0
    %197 = vmatpush1.msra.mxu0 %v66
    %198 = vmatprep.subr.mxu0 0.0
    %199 = vmatpush1.msra.mxu0 0.0
    %200 = vmatprep.subr.mxu0 0.0
    %201 = vmatpush1.msra.mxu0 0.0
    %202 = vmatprep.subr.mxu0 0.0
    %203 = vmatpush1.msra.mxu0 0.0
    %204 = vmatprep.subr.mxu0 0.0
    %205 = vmatpush1.msra.mxu0 0.0
    %206 = vmatprep.subr.mxu0 0.0
    %207 = vmatpush1.msra.mxu0 0.0
    %208 = vmatprep.subr.mxu0 0.0
    %209 = vmatpush1.msra.mxu0 0.0
    %210 = vmatprep.subr.mxu0 0.0
    %211 = vmatpush1.msra.mxu0 0.0
    %212 = vmatprep.subr.mxu0 0.0
    %213 = vmatpush1.msra.mxu0 0.0
    %214 = vmatprep.subr.mxu0 0.0
    %215 = vmatpush1.msra.mxu0 0.0
    %216 = vmatprep.subr.mxu0 0.0
    %217 = vmatpush1.msra.mxu0 0.0
    %218 = vmatprep.subr.mxu0 0.0
    %219 = vmatpush1.msra.mxu0 0.0
    %220 = vmatprep.subr.mxu0 0.0
    %221 = vmatpush1.msra.mxu0 0.0
    %222 = vmatprep.subr.mxu0 0.0
    %223 = vmatpush1.msra.mxu0 0.0
    %224 = vmatprep.subr.mxu0 0.0
    %225 = vmatpush1.msra.mxu0 0.0
    %226 = vmatprep.subr.mxu0 0.0
    %227 = vmatpush1.msra.mxu0 0.0
    %228 = vmatprep.subr.mxu0 0.0
    %229 = vmatpush1.msra.mxu0 0.0
    %230 = vmatprep.mubr.f32.mxu0 0.0
    %231 = vmatmul.mubr.f32.gmra.mrb[0].mxu0 %v165
    %v232 = vpop.f32.mrb[0].mxu0
    %v233 = vadd.f32 0.0, %v232
    %v234 = vpop.f32.mrb[0].mxu0
    %235 = vdwg.mxu0
    %v236 = vmax.f32 %v233, 1e-30
    %v237 = vlog2.pop %v236
    %v238 = vmul.f32 %v237, 0.6931472
    %v239 = vadd.f32 %v162, %v238
    %v240 = vadd.f32 %v239, %v160
    %s241 = sadd.s32 %s150, 1
    %v242 = vstv %s241
    %vm243 = vcmp.lt.s32.totalorder %v242, %v67
    %v244 = vsel %vm243, 1, 0
    %245 = vset.pattern.permute.xlu0 0
    %246 = vperm.xlu0 %245, %v244
    %v247 = vpop.permute.xlu0 %246
    %vm248 = vcmp.eq.s32.totalorder %v247, 1
    %v249 = vsel %vm248, %v240, %v158
    %s250 = scalar_lea.vmem [#allocation3], 16
    %v251 = vld [vmem:[%s250] sm:$0xff]
    %252 = vmax.xlane.f32.xlu0 %v249
    %v253 = vpop.xlane.xlu0 %252
    %v254 = vsub.f32 %v249, %v253
    %v255 = vmul.f32 %v254, 1.442695
    %v256 = vpow.pop %v255
    %257 = vmatprep.subr.mxu0 0.0
    %258 = vmatpush1.msra.mxu0 %v51
    %259 = vmatprep.subr.mxu0 0.0
    %260 = vmatpush1.msra.mxu0 %v52
    %261 = vmatprep.subr.mxu0 0.0
    %262 = vmatpush1.msra.mxu0 %v53
    %263 = vmatprep.subr.mxu0 0.0
    %264 = vmatpush1.msra.mxu0 %v54
    %265 = vmatprep.subr.mxu0 0.0
    %266 = vmatpush1.msra.mxu0 %v55
    %267 = vmatprep.subr.mxu0 0.0
    %268 = vmatpush1.msra.mxu0 %v56
    %269 = vmatprep.subr.mxu0 0.0
    %270 = vmatpush1.msra.mxu0 %v57
    %271 = vmatprep.subr.mxu0 0.0
    %272 = vmatpush1.msra.mxu0 %v58
    %273 = vmatprep.subr.mxu0 0.0
    %274 = vmatpush1.msra.mxu0 %v59
    %275 = vmatprep.subr.mxu0 0.0
    %276 = vmatpush1.msra.mxu0 %v60
    %277 = vmatprep.subr.mxu0 0.0
    %278 = vmatpush1.msra.mxu0 %v61
    %279 = vmatprep.subr.mxu0 0.0
    %280 = vmatpush1.msra.mxu0 %v62
    %281 = vmatprep.subr.mxu0 0.0
    %282 = vmatpush1.msra.mxu0 %v63
    %283 = vmatprep.subr.mxu0 0.0
    %284 = vmatpush1.msra.mxu0 %v64
    %285 = vmatprep.subr.mxu0 0.0
    %286 = vmatpush1.msra.mxu0 %v65
    %287 = vmatprep.subr.mxu0 0.0
    %288 = vmatpush1.msra.mxu0 %v66
    %289 = vmatprep.subr.mxu0 0.0
    %290 = vmatpush1.msra.mxu0 0.0
    %291 = vmatprep.subr.mxu0 0.0
    %292 = vmatpush1.msra.mxu0 0.0
    %293 = vmatprep.subr.mxu0 0.0
    %294 = vmatpush1.msra.mxu0 0.0
    %295 = vmatprep.subr.mxu0 0.0
    %296 = vmatpush1.msra.mxu0 0.0
    %297 = vmatprep.subr.mxu0 0.0
    %298 = vmatpush1.msra.mxu0 0.0
    %299 = vmatprep.subr.mxu0 0.0
    %300 = vmatpush1.msra.mxu0 0.0
    %301 = vmatprep.subr.mxu0 0.0
    %302 = vmatpush1.msra.mxu0 0.0
    %303 = vmatprep.subr.mxu0 0.0
    %304 = vmatpush1.msra.mxu0 0.0
    %305 = vmatprep.subr.mxu0 0.0
    %306 = vmatpush1.msra.mxu0 0.0
    %307 = vmatprep.subr.mxu0 0.0
    %308 = vmatpush1.msra.mxu0 0.0
    %309 = vmatprep.subr.mxu0 0.0
    %310 = vmatpush1.msra.mxu0 0.0
    %311 = vmatprep.subr.mxu0 0.0
    %312 = vmatpush1.msra.mxu0 0.0
    %313 = vmatprep.subr.mxu0 0.0
    %314 = vmatpush1.msra.mxu0 0.0
    %315 = vmatprep.subr.mxu0 0.0
    %316 = vmatpush1.msra.mxu0 0.0
    %317 = vmatprep.subr.mxu0 0.0
    %318 = vmatpush1.msra.mxu0 0.0
    %319 = vmatprep.subr.mxu0 0.0
    %320 = vmatpush1.msra.mxu0 0.0
    %321 = vmatprep.mubr.f32.mxu0 0.0
    %322 = vmatmul.mubr.f32.gmra.mrb[0].mxu0 %v256
    %v323 = vpop.f32.mrb[0].mxu0
    %v324 = vadd.f32 0.0, %v323
    %v325 = vpop.f32.mrb[0].mxu0
    %326 = vdwg.mxu0
    %v327 = vmax.f32 %v324, 1e-30
    %v328 = vlog2.pop %v327
    %v329 = vmul.f32 %v328, 0.6931472
    %v330 = vadd.f32 %v253, %v329
    %v331 = vadd.f32 %v330, %v251
    %s332 = sadd.s32 %s150, 2
    %v333 = vstv %s332
    %vm334 = vcmp.lt.s32.totalorder %v333, %v67
    %v335 = vsel %vm334, 1, 0
    %336 = vset.pattern.permute.xlu0 0
    %337 = vperm.xlu0 %336, %v335
    %v338 = vpop.permute.xlu0 %337
    %vm339 = vcmp.eq.s32.totalorder %v338, 1
    %v340 = vsel %vm339, %v331, %v249
    %s341 = scalar_lea.vmem [#allocation3], 24
    %v342 = vld [vmem:[%s341] sm:$0xff]
    %343 = vmax.xlane.f32.xlu0 %v340
    %v344 = vpop.xlane.xlu0 %343
    %v345 = vsub.f32 %v340, %v344
    %v346 = vmul.f32 %v345, 1.442695
    %v347 = vpow.pop %v346
    %348 = vmatprep.subr.mxu0 0.0
    %349 = vmatpush1.msra.mxu0 %v51
    %350 = vmatprep.subr.mxu0 0.0
    %351 = vmatpush1.msra.mxu0 %v52
    %352 = vmatprep.subr.mxu0 0.0
    %353 = vmatpush1.msra.mxu0 %v53
    %354 = vmatprep.subr.mxu0 0.0
    %355 = vmatpush1.msra.mxu0 %v54
    %356 = vmatprep.subr.mxu0 0.0
    %357 = vmatpush1.msra.mxu0 %v55
    %358 = vmatprep.subr.mxu0 0.0
    %359 = vmatpush1.msra.mxu0 %v56
    %360 = vmatprep.subr.mxu0 0.0
    %361 = vmatpush1.msra.mxu0 %v57
    %362 = vmatprep.subr.mxu0 0.0
    %363 = vmatpush1.msra.mxu0 %v58
    %364 = vmatprep.subr.mxu0 0.0
    %365 = vmatpush1.msra.mxu0 %v59
    %366 = vmatprep.subr.mxu0 0.0
    %367 = vmatpush1.msra.mxu0 %v60
    %368 = vmatprep.subr.mxu0 0.0
    %369 = vmatpush1.msra.mxu0 %v61
    %370 = vmatprep.subr.mxu0 0.0
    %371 = vmatpush1.msra.mxu0 %v62
    %372 = vmatprep.subr.mxu0 0.0
    %373 = vmatpush1.msra.mxu0 %v63
    %374 = vmatprep.subr.mxu0 0.0
    %375 = vmatpush1.msra.mxu0 %v64
    %376 = vmatprep.subr.mxu0 0.0
    %377 = vmatpush1.msra.mxu0 %v65
    %378 = vmatprep.subr.mxu0 0.0
    %379 = vmatpush1.msra.mxu0 %v66
    %380 = vmatprep.subr.mxu0 0.0
    %381 = vmatpush1.msra.mxu0 0.0
    %382 = vmatprep.subr.mxu0 0.0
    %383 = vmatpush1.msra.mxu0 0.0
    %384 = vmatprep.subr.mxu0 0.0
    %385 = vmatpush1.msra.mxu0 0.0
    %386 = vmatprep.subr.mxu0 0.0
    %387 = vmatpush1.msra.mxu0 0.0
    %388 = vmatprep.subr.mxu0 0.0
    %389 = vmatpush1.msra.mxu0 0.0
    %390 = vmatprep.subr.mxu0 0.0
    %391 = vmatpush1.msra.mxu0 0.0
    %392 = vmatprep.subr.mxu0 0.0
    %393 = vmatpush1.msra.mxu0 0.0
    %394 = vmatprep.subr.mxu0 0.0
    %395 = vmatpush1.msra.mxu0 0.0
    %396 = vmatprep.subr.mxu0 0.0
    %397 = vmatpush1.msra.mxu0 0.0
    %398 = vmatprep.subr.mxu0 0.0
    %399 = vmatpush1.msra.mxu0 0.0
    %400 = vmatprep.subr.mxu0 0.0
    %401 = vmatpush1.msra.mxu0 0.0
    %402 = vmatprep.subr.mxu0 0.0
    %403 = vmatpush1.msra.mxu0 0.0
    %404 = vmatprep.subr.mxu0 0.0
    %405 = vmatpush1.msra.mxu0 0.0
    %406 = vmatprep.subr.mxu0 0.0
    %407 = vmatpush1.msra.mxu0 0.0
    %408 = vmatprep.subr.mxu0 0.0
    %409 = vmatpush1.msra.mxu0 0.0
    %410 = vmatprep.subr.mxu0 0.0
    %411 = vmatpush1.msra.mxu0 0.0
    %412 = vmatprep.mubr.f32.mxu0 0.0
    %413 = vmatmul.mubr.f32.gmra.mrb[0].mxu0 %v347
    %v414 = vpop.f32.mrb[0].mxu0
    %v415 = vadd.f32 0.0, %v414
    %v416 = vpop.f32.mrb[0].mxu0
    %417 = vdwg.mxu0
    %v418 = vmax.f32 %v415, 1e-30
    %v419 = vlog2.pop %v418
    %v420 = vmul.f32 %v419, 0.6931472
    %v421 = vadd.f32 %v344, %v420
    %v422 = vadd.f32 %v421, %v342
    %s423 = sadd.s32 %s150, 3
    %v424 = vstv %s423
    %vm425 = vcmp.lt.s32.totalorder %v424, %v67
    %v426 = vsel %vm425, 1, 0
    %427 = vset.pattern.permute.xlu0 0
    %428 = vperm.xlu0 %427, %v426
    %v429 = vpop.permute.xlu0 %428
    %vm430 = vcmp.eq.s32.totalorder %v429, 1
    %v431 = vsel %vm430, %v422, %v340
    %s432 = scalar_lea.vmem [#allocation3], 32
    %v433 = vld [vmem:[%s432] sm:$0xff]
    %434 = vmax.xlane.f32.xlu0 %v431
    %v435 = vpop.xlane.xlu0 %434
    %v436 = vsub.f32 %v431, %v435
    %v437 = vmul.f32 %v436, 1.442695
    %v438 = vpow.pop %v437
    %439 = vmatprep.subr.mxu0 0.0
    %440 = vmatpush1.msra.mxu0 %v51
    %441 = vmatprep.subr.mxu0 0.0
    %442 = vmatpush1.msra.mxu0 %v52
    %443 = vmatprep.subr.mxu0 0.0
    %444 = vmatpush1.msra.mxu0 %v53
    %445 = vmatprep.subr.mxu0 0.0
    %446 = vmatpush1.msra.mxu0 %v54
    %447 = vmatprep.subr.mxu0 0.0
    %448 = vmatpush1.msra.mxu0 %v55
    %449 = vmatprep.subr.mxu0 0.0
    %450 = vmatpush1.msra.mxu0 %v56
    %451 = vmatprep.subr.mxu0 0.0
    %452 = vmatpush1.msra.mxu0 %v57
    %453 = vmatprep.subr.mxu0 0.0
    %454 = vmatpush1.msra.mxu0 %v58
    %455 = vmatprep.subr.mxu0 0.0
    %456 = vmatpush1.msra.mxu0 %v59
    %457 = vmatprep.subr.mxu0 0.0
    %458 = vmatpush1.msra.mxu0 %v60
    %459 = vmatprep.subr.mxu0 0.0
    %460 = vmatpush1.msra.mxu0 %v61
    %461 = vmatprep.subr.mxu0 0.0
    %462 = vmatpush1.msra.mxu0 %v62
    %463 = vmatprep.subr.mxu0 0.0
    %464 = vmatpush1.msra.mxu0 %v63
    %465 = vmatprep.subr.mxu0 0.0
    %466 = vmatpush1.msra.mxu0 %v64
    %467 = vmatprep.subr.mxu0 0.0
    %468 = vmatpush1.msra.mxu0 %v65
    %469 = vmatprep.subr.mxu0 0.0
    %470 = vmatpush1.msra.mxu0 %v66
    %471 = vmatprep.subr.mxu0 0.0
    %472 = vmatpush1.msra.mxu0 0.0
    %473 = vmatprep.subr.mxu0 0.0
    %474 = vmatpush1.msra.mxu0 0.0
    %475 = vmatprep.subr.mxu0 0.0
    %476 = vmatpush1.msra.mxu0 0.0
    %477 = vmatprep.subr.mxu0 0.0
    %478 = vmatpush1.msra.mxu0 0.0
    %479 = vmatprep.subr.mxu0 0.0
    %480 = vmatpush1.msra.mxu0 0.0
    %481 = vmatprep.subr.mxu0 0.0
    %482 = vmatpush1.msra.mxu0 0.0
    %483 = vmatprep.subr.mxu0 0.0
    %484 = vmatpush1.msra.mxu0 0.0
    %485 = vmatprep.subr.mxu0 0.0
    %486 = vmatpush1.msra.mxu0 0.0
    %487 = vmatprep.subr.mxu0 0.0
    %488 = vmatpush1.msra.mxu0 0.0
    %489 = vmatprep.subr.mxu0 0.0
    %490 = vmatpush1.msra.mxu0 0.0
    %491 = vmatprep.subr.mxu0 0.0
    %492 = vmatpush1.msra.mxu0 0.0
    %493 = vmatprep.subr.mxu0 0.0
    %494 = vmatpush1.msra.mxu0 0.0
    %495 = vmatprep.subr.mxu0 0.0
    %496 = vmatpush1.msra.mxu0 0.0
    %497 = vmatprep.subr.mxu0 0.0
    %498 = vmatpush1.msra.mxu0 0.0
    %499 = vmatprep.subr.mxu0 0.0
    %500 = vmatpush1.msra.mxu0 0.0
    %501 = vmatprep.subr.mxu0 0.0
    %502 = vmatpush1.msra.mxu0 0.0
    %503 = vmatprep.mubr.f32.mxu0 0.0
    %504 = vmatmul.mubr.f32.gmra.mrb[0].mxu0 %v438
    %v505 = vpop.f32.mrb[0].mxu0
    %v506 = vadd.f32 0.0, %v505
    %v507 = vpop.f32.mrb[0].mxu0
    %508 = vdwg.mxu0
    %v509 = vmax.f32 %v506, 1e-30
    %v510 = vlog2.pop %v509
    %v511 = vmul.f32 %v510, 0.6931472
    %v512 = vadd.f32 %v435, %v511
    %v513 = vadd.f32 %v512, %v433
    %s514 = sadd.s32 %s150, 4
    %v515 = vstv %s514
    %vm516 = vcmp.lt.s32.totalorder %v515, %v67
    %v517 = vsel %vm516, 1, 0
    %518 = vset.pattern.permute.xlu0 0
    %519 = vperm.xlu0 %518, %v517
    %v520 = vpop.permute.xlu0 %519
    %vm521 = vcmp.eq.s32.totalorder %v520, 1
    %v522 = vsel %vm521, %v513, %v431
    %s523 = scalar_lea.vmem [#allocation3], 40
    %v524 = vld [vmem:[%s523] sm:$0xff]
    %525 = vmax.xlane.f32.xlu0 %v522
    %v526 = vpop.xlane.xlu0 %525
    %v527 = vsub.f32 %v522, %v526
    %v528 = vmul.f32 %v527, 1.442695
    %v529 = vpow.pop %v528
    %530 = vmatprep.subr.mxu0 0.0
    %531 = vmatpush1.msra.mxu0 %v51
    %532 = vmatprep.subr.mxu0 0.0
    %533 = vmatpush1.msra.mxu0 %v52
    %534 = vmatprep.subr.mxu0 0.0
    %535 = vmatpush1.msra.mxu0 %v53
    %536 = vmatprep.subr.mxu0 0.0
    %537 = vmatpush1.msra.mxu0 %v54
    %538 = vmatprep.subr.mxu0 0.0
    %539 = vmatpush1.msra.mxu0 %v55
    %540 = vmatprep.subr.mxu0 0.0
    %541 = vmatpush1.msra.mxu0 %v56
    %542 = vmatprep.subr.mxu0 0.0
    %543 = vmatpush1.msra.mxu0 %v57
    %544 = vmatprep.subr.mxu0 0.0
    %545 = vmatpush1.msra.mxu0 %v58
    %546 = vmatprep.subr.mxu0 0.0
    %547 = vmatpush1.msra.mxu0 %v59
    %548 = vmatprep.subr.mxu0 0.0
    %549 = vmatpush1.msra.mxu0 %v60
    %550 = vmatprep.subr.mxu0 0.0
    %551 = vmatpush1.msra.mxu0 %v61
    %552 = vmatprep.subr.mxu0 0.0
    %553 = vmatpush1.msra.mxu0 %v62
    %554 = vmatprep.subr.mxu0 0.0
    %555 = vmatpush1.msra.mxu0 %v63
    %556 = vmatprep.subr.mxu0 0.0
    %557 = vmatpush1.msra.mxu0 %v64
    %558 = vmatprep.subr.mxu0 0.0
    %559 = vmatpush1.msra.mxu0 %v65
    %560 = vmatprep.subr.mxu0 0.0
    %561 = vmatpush1.msra.mxu0 %v66
    %562 = vmatprep.subr.mxu0 0.0
    %563 = vmatpush1.msra.mxu0 0.0
    %564 = vmatprep.subr.mxu0 0.0
    %565 = vmatpush1.msra.mxu0 0.0
    %566 = vmatprep.subr.mxu0 0.0
    %567 = vmatpush1.msra.mxu0 0.0
    %568 = vmatprep.subr.mxu0 0.0
    %569 = vmatpush1.msra.mxu0 0.0
    %570 = vmatprep.subr.mxu0 0.0
    %571 = vmatpush1.msra.mxu0 0.0
    %572 = vmatprep.subr.mxu0 0.0
    %573 = vmatpush1.msra.mxu0 0.0
    %574 = vmatprep.subr.mxu0 0.0
    %575 = vmatpush1.msra.mxu0 0.0
    %576 = vmatprep.subr.mxu0 0.0
    %577 = vmatpush1.msra.mxu0 0.0
    %578 = vmatprep.subr.mxu0 0.0
    %579 = vmatpush1.msra.mxu0 0.0
    %580 = vmatprep.subr.mxu0 0.0
    %581 = vmatpush1.msra.mxu0 0.0
    %582 = vmatprep.subr.mxu0 0.0
    %583 = vmatpush1.msra.mxu0 0.0
    %584 = vmatprep.subr.mxu0 0.0
    %585 = vmatpush1.msra.mxu0 0.0
    %586 = vmatprep.subr.mxu0 0.0
    %587 = vmatpush1.msra.mxu0 0.0
    %588 = vmatprep.subr.mxu0 0.0
    %589 = vmatpush1.msra.mxu0 0.0
    %590 = vmatprep.subr.mxu0 0.0
    %591 = vmatpush1.msra.mxu0 0.0
    %592 = vmatprep.subr.mxu0 0.0
    %593 = vmatpush1.msra.mxu0 0.0
    %594 = vmatprep.mubr.f32.mxu0 0.0
    %595 = vmatmul.mubr.f32.gmra.mrb[0].mxu0 %v529
    %v596 = vpop.f32.mrb[0].mxu0
    %v597 = vadd.f32 0.0, %v596
    %v598 = vpop.f32.mrb[0].mxu0
    %599 = vdwg.mxu0
    %v600 = vmax.f32 %v597, 1e-30
    %v601 = vlog2.pop %v600
    %v602 = vmul.f32 %v601, 0.6931472
    %v603 = vadd.f32 %v526, %v602
    %v604 = vadd.f32 %v603, %v524
    %s605 = sadd.s32 %s150, 5
    %v606 = vstv %s605
    %vm607 = vcmp.lt.s32.totalorder %v606, %v67
    %v608 = vsel %vm607, 1, 0
    %609 = vset.pattern.permute.xlu0 0
    %610 = vperm.xlu0 %609, %v608
    %v611 = vpop.permute.xlu0 %610
    %vm612 = vcmp.eq.s32.totalorder %v611, 1
    %v613 = vsel %vm612, %v604, %v522
    %s614 = scalar_lea.vmem [#allocation3], 48
    %v615 = vld [vmem:[%s614] sm:$0xff]
    %616 = vmax.xlane.f32.xlu0 %v613
    %v617 = vpop.xlane.xlu0 %616
    %v618 = vsub.f32 %v613, %v617
    %v619 = vmul.f32 %v618, 1.442695
    %v620 = vpow.pop %v619
    %621 = vmatprep.subr.mxu0 0.0
    %622 = vmatpush1.msra.mxu0 %v51
    %623 = vmatprep.subr.mxu0 0.0
    %624 = vmatpush1.msra.mxu0 %v52
    %625 = vmatprep.subr.mxu0 0.0
    %626 = vmatpush1.msra.mxu0 %v53
    %627 = vmatprep.subr.mxu0 0.0
    %628 = vmatpush1.msra.mxu0 %v54
    %629 = vmatprep.subr.mxu0 0.0
    %630 = vmatpush1.msra.mxu0 %v55
    %631 = vmatprep.subr.mxu0 0.0
    %632 = vmatpush1.msra.mxu0 %v56
    %633 = vmatprep.subr.mxu0 0.0
    %634 = vmatpush1.msra.mxu0 %v57
    %635 = vmatprep.subr.mxu0 0.0
    %636 = vmatpush1.msra.mxu0 %v58
    %637 = vmatprep.subr.mxu0 0.0
    %638 = vmatpush1.msra.mxu0 %v59
    %639 = vmatprep.subr.mxu0 0.0
    %640 = vmatpush1.msra.mxu0 %v60
    %641 = vmatprep.subr.mxu0 0.0
    %642 = vmatpush1.msra.mxu0 %v61
    %643 = vmatprep.subr.mxu0 0.0
    %644 = vmatpush1.msra.mxu0 %v62
    %645 = vmatprep.subr.mxu0 0.0
    %646 = vmatpush1.msra.mxu0 %v63
    %647 = vmatprep.subr.mxu0 0.0
    %648 = vmatpush1.msra.mxu0 %v64
    %649 = vmatprep.subr.mxu0 0.0
    %650 = vmatpush1.msra.mxu0 %v65
    %651 = vmatprep.subr.mxu0 0.0
    %652 = vmatpush1.msra.mxu0 %v66
    %653 = vmatprep.subr.mxu0 0.0
    %654 = vmatpush1.msra.mxu0 0.0
    %655 = vmatprep.subr.mxu0 0.0
    %656 = vmatpush1.msra.mxu0 0.0
    %657 = vmatprep.subr.mxu0 0.0
    %658 = vmatpush1.msra.mxu0 0.0
    %659 = vmatprep.subr.mxu0 0.0
    %660 = vmatpush1.msra.mxu0 0.0
    %661 = vmatprep.subr.mxu0 0.0
    %662 = vmatpush1.msra.mxu0 0.0
    %663 = vmatprep.subr.mxu0 0.0
    %664 = vmatpush1.msra.mxu0 0.0
    %665 = vmatprep.subr.mxu0 0.0
    %666 = vmatpush1.msra.mxu0 0.0
    %667 = vmatprep.subr.mxu0 0.0
    %668 = vmatpush1.msra.mxu0 0.0
    %669 = vmatprep.subr.mxu0 0.0
    %670 = vmatpush1.msra.mxu0 0.0
    %671 = vmatprep.subr.mxu0 0.0
    %672 = vmatpush1.msra.mxu0 0.0
    %673 = vmatprep.subr.mxu0 0.0
    %674 = vmatpush1.msra.mxu0 0.0
    %675 = vmatprep.subr.mxu0 0.0
    %676 = vmatpush1.msra.mxu0 0.0
    %677 = vmatprep.subr.mxu0 0.0
    %678 = vmatpush1.msra.mxu0 0.0
    %679 = vmatprep.subr.mxu0 0.0
    %680 = vmatpush1.msra.mxu0 0.0
    %681 = vmatprep.subr.mxu0 0.0
    %682 = vmatpush1.msra.mxu0 0.0
    %683 = vmatprep.subr.mxu0 0.0
    %684 = vmatpush1.msra.mxu0 0.0
    %685 = vmatprep.mubr.f32.mxu0 0.0
    %686 = vmatmul.mubr.f32.gmra.mrb[0].mxu0 %v620
    %v687 = vpop.f32.mrb[0].mxu0
    %v688 = vadd.f32 0.0, %v687
    %v689 = vpop.f32.mrb[0].mxu0
    %690 = vdwg.mxu0
    %v691 = vmax.f32 %v688, 1e-30
    %v692 = vlog2.pop %v691
    %v693 = vmul.f32 %v692, 0.6931472
    %v694 = vadd.f32 %v617, %v693
    %v695 = vadd.f32 %v694, %v615
    %s696 = sadd.s32 %s150, 6
    %v697 = vstv %s696
    %vm698 = vcmp.lt.s32.totalorder %v697, %v67
    %v699 = vsel %vm698, 1, 0
    %700 = vset.pattern.permute.xlu0 0
    %701 = vperm.xlu0 %700, %v699
    %v702 = vpop.permute.xlu0 %701
    %vm703 = vcmp.eq.s32.totalorder %v702, 1
    %v704 = vsel %vm703, %v695, %v613
    %s705 = scalar_lea.vmem [#allocation3], 56
    %v706 = vld [vmem:[%s705] sm:$0xff]
    %707 = vmax.xlane.f32.xlu0 %v704
    %v708 = vpop.xlane.xlu0 %707
    %v709 = vsub.f32 %v704, %v708
    %v710 = vmul.f32 %v709, 1.442695
    %v711 = vpow.pop %v710
    %712 = vmatprep.subr.mxu0 0.0
    %713 = vmatpush1.msra.mxu0 %v51
    %714 = vmatprep.subr.mxu0 0.0
    %715 = vmatpush1.msra.mxu0 %v52
    %716 = vmatprep.subr.mxu0 0.0
    %717 = vmatpush1.msra.mxu0 %v53
    %718 = vmatprep.subr.mxu0 0.0
    %719 = vmatpush1.msra.mxu0 %v54
    %720 = vmatprep.subr.mxu0 0.0
    %721 = vmatpush1.msra.mxu0 %v55
    %722 = vmatprep.subr.mxu0 0.0
    %723 = vmatpush1.msra.mxu0 %v56
    %724 = vmatprep.subr.mxu0 0.0
    %725 = vmatpush1.msra.mxu0 %v57
    %726 = vmatprep.subr.mxu0 0.0
    %727 = vmatpush1.msra.mxu0 %v58
    %728 = vmatprep.subr.mxu0 0.0
    %729 = vmatpush1.msra.mxu0 %v59
    %730 = vmatprep.subr.mxu0 0.0
    %731 = vmatpush1.msra.mxu0 %v60
    %732 = vmatprep.subr.mxu0 0.0
    %733 = vmatpush1.msra.mxu0 %v61
    %734 = vmatprep.subr.mxu0 0.0
    %735 = vmatpush1.msra.mxu0 %v62
    %736 = vmatprep.subr.mxu0 0.0
    %737 = vmatpush1.msra.mxu0 %v63
    %738 = vmatprep.subr.mxu0 0.0
    %739 = vmatpush1.msra.mxu0 %v64
    %740 = vmatprep.subr.mxu0 0.0
    %741 = vmatpush1.msra.mxu0 %v65
    %742 = vmatprep.subr.mxu0 0.0
    %743 = vmatpush1.msra.mxu0 %v66
    %744 = vmatprep.subr.mxu0 0.0
    %745 = vmatpush1.msra.mxu0 0.0
    %746 = vmatprep.subr.mxu0 0.0
    %747 = vmatpush1.msra.mxu0 0.0
    %748 = vmatprep.subr.mxu0 0.0
    %749 = vmatpush1.msra.mxu0 0.0
    %750 = vmatprep.subr.mxu0 0.0
    %751 = vmatpush1.msra.mxu0 0.0
    %752 = vmatprep.subr.mxu0 0.0
    %753 = vmatpush1.msra.mxu0 0.0
    %754 = vmatprep.subr.mxu0 0.0
    %755 = vmatpush1.msra.mxu0 0.0
    %756 = vmatprep.subr.mxu0 0.0
    %757 = vmatpush1.msra.mxu0 0.0
    %758 = vmatprep.subr.mxu0 0.0
    %759 = vmatpush1.msra.mxu0 0.0
    %760 = vmatprep.subr.mxu0 0.0
    %761 = vmatpush1.msra.mxu0 0.0
    %762 = vmatprep.subr.mxu0 0.0
    %763 = vmatpush1.msra.mxu0 0.0
    %764 = vmatprep.subr.mxu0 0.0
    %765 = vmatpush1.msra.mxu0 0.0
    %766 = vmatprep.subr.mxu0 0.0
    %767 = vmatpush1.msra.mxu0 0.0
    %768 = vmatprep.subr.mxu0 0.0
    %769 = vmatpush1.msra.mxu0 0.0
    %770 = vmatprep.subr.mxu0 0.0
    %771 = vmatpush1.msra.mxu0 0.0
    %772 = vmatprep.subr.mxu0 0.0
    %773 = vmatpush1.msra.mxu0 0.0
    %774 = vmatprep.subr.mxu0 0.0
    %775 = vmatpush1.msra.mxu0 0.0
    %776 = vmatprep.mubr.f32.mxu0 0.0
    %777 = vmatmul.mubr.f32.gmra.mrb[0].mxu0 %v711
    %v778 = vpop.f32.mrb[0].mxu0
    %v779 = vadd.f32 0.0, %v778
    %v780 = vpop.f32.mrb[0].mxu0
    %781 = vdwg.mxu0
    %v782 = vmax.f32 %v779, 1e-30
    %v783 = vlog2.pop %v782
    %v784 = vmul.f32 %v783, 0.6931472
    %v785 = vadd.f32 %v708, %v784
    %v786 = vadd.f32 %v785, %v706
    %s787 = sadd.s32 %s150, 7
    %v788 = vstv %s787
    %vm789 = vcmp.lt.s32.totalorder %v788, %v67
    %v790 = vsel %vm789, 1, 0
    %791 = vset.pattern.permute.xlu0 0
    %792 = vperm.xlu0 %791, %v790
    %v793 = vpop.permute.xlu0 %792
    %vm794 = vcmp.eq.s32.totalorder %v793, 1
    %v795 = vsel %vm794, %v786, %v704
    %796 = vst [vmem:[#allocation2] sm:$0xff] %v795
    // Predicated region
    $region30: #{tpu_custom_call.1} parent=1 // pred_check
      %p797 = pneg %p45
    $region31: #{tpu_custom_call.1} parent=1 // pred_check_branch
      %799 = sbr.rel (%p797) target = $region33
    $region32: #{tpu_custom_call.1} parent=1 // pred_region
      %v800 = vld [vmem:[#allocation2] sm:$0xff]
      %801 = vmax.xlane.f32.xlu0 %v800
      %v802 = vpop.xlane.xlu0 %801
      %v803 = vsub.f32 %v800, %v802
      %v804 = vmul.f32 %v803, 1.442695
      %v805 = vpow.pop %v804
      %806 = vadd.xlane.f32.xlu0 %v805
      %v807 = vpop.xlane.xlu0 %806
      %v808 = vlog2.pop %v807
      %v809 = vmul.f32 %v808, 0.6931472
      %v810 = vadd.f32 %v802, %v809
      %vm811 = vcmask 7168
      %812 = vst.msk [vmem:[%s4] sm:$0xff] %vm811, %v810
    $region33: #{tpu_custom_call.1} parent=1 // pred_fallthru
      _
    // Predicated region
    $region34: #{tpu_custom_call.1} parent=1 // pred_check
      _
    $region35: #{tpu_custom_call.1} parent=1 // pred_check_branch
      %814 = sbr.rel (0) target = $region37
    $region36: #{tpu_custom_call.1} parent=1 // pred_region
      _
    $region37: #{tpu_custom_call.1} parent=1 // pred_fallthru
      _
    // Predicated region
    $region38: #{tpu_custom_call.1} parent=1 // pred_check
      _
    $region39: #{tpu_custom_call.1} parent=1 // pred_check_branch
      %816 = sbr.rel (0) target = $region41
    $region40: #{tpu_custom_call.1} parent=1 // pred_region
      _
    $region41: #{tpu_custom_call.1} parent=1 // pred_fallthru
      _
    %817 = vsyncpa [#allocation4], 1
    %818 = vsyncpa [#allocation6], 1

</llo_original>
